<compile_context>
chip_gen: v7x
topology: tpu7x:2x2x1
jax: 0.10.0
libtpu: 0.0.40
codegen_flags: <defaults>
</compile_context>

<pallas_src>
import functools

import jax
import jax.numpy as jnp
from jax import lax
from jax.experimental import pallas as pl
from jax.experimental.pallas import tpu as pltpu


# --------------------------------------------------------------------------
# kernels
# --------------------------------------------------------------------------
def _gram_mse_kernel(f_ref, t_hbm, g_ref, loss_ref, t_vmem, t_sem, *,
                     inv_norm, inv_count):
    """Grid axis 0 = contraction (K) reduction over feature-column tiles.

    f_ref   : (Np, tk)  feature tile (f32 or bf16), streamed
    t_hbm   : (Np, Np)  target gram, raw HBM ref (memory_space=pl.ANY)
    g_ref   : (Np, Np)  f32 gram output, VMEM-resident across the K axis
    loss_ref: (1,)      f32 scalar loss in SMEM
    t_vmem  : (Np, Np)  f32 scratch for the target (filled by async DMA)
    t_sem   : DMA semaphore for the target copy
    """
    k = pl.program_id(0)
    nk = pl.num_programs(0)

    @pl.when(k == 0)
    def _init():
        g_ref[...] = jnp.zeros_like(g_ref)
        # Kick off the target-gram fetch now; it is only consumed in the
        # final-step epilogue, so its latency hides behind the whole K loop.
        pltpu.make_async_copy(t_hbm, t_vmem, t_sem).start()

    f = f_ref[...]
    # F @ F.T without an explicit transpose: contract the trailing dim of both
    # operands (keeps the XLU out of the inner loop, f32 accumulation on MXU).
    g_ref[...] += lax.dot_general(
        f, f,
        dimension_numbers=(((1,), (1,)), ((), ())),
        preferred_element_type=jnp.float32,
    )

    @pl.when(k == nk - 1)
    def _finalize():
        G = g_ref[...] * inv_norm          # gram / (a*b*c*d)
        g_ref[...] = G
        pltpu.make_async_copy(t_hbm, t_vmem, t_sem).wait()
        diff = G - t_vmem[...]
        # Padded rows/cols are zero in both G and target -> contribute 0;
        # divide by the true N*N to match F.mse_loss (mean reduction).
        loss_ref[0] = jnp.sum(diff * diff) * inv_count


def _gram_kernel(f_ref, g_ref, *, inv_norm):
    """Gram matrix only (used to build the stored target in __init__)."""
    k = pl.program_id(0)
    nk = pl.num_programs(0)

    @pl.when(k == 0)
    def _init():
        g_ref[...] = jnp.zeros_like(g_ref)

    f = f_ref[...]
    g_ref[...] += lax.dot_general(
        f, f,
        dimension_numbers=(((1,), (1,)), ((), ())),
        preferred_element_type=jnp.float32,
    )

    @pl.when(k == nk - 1)
    def _finalize():
        g_ref[...] = g_ref[...] * inv_norm


# --------------------------------------------------------------------------
# tiling helpers
# --------------------------------------------------------------------------
def _round_up(x, m):
    return ((x + m - 1) // m) * m


def _vmem_capacity_bytes():
    try:
        cap = int(pltpu.get_tpu_info().vmem_capacity_bytes)
        if cap > 0:
            return cap
    except Exception:
        pass
    return 64 << 20  # conservative default (v7x-sized)


def _budgets():
    """(feature-stream budget, scoped-VMEM limit ceiling) per chip generation."""
    cap = _vmem_capacity_bytes()
    if cap >= (96 << 20):            # v5e / v6e: 128 MiB VMEM
        return 24 << 20, 96 << 20
    return 12 << 20, 48 << 20        # v7x: 64 MiB physical


def _choose_tk(Mp, Np, itemsize, stream_budget):
    """Largest lane-aligned (x128) contraction tile such that the
    double-buffered feature stream fits `stream_budget` and tk divides Mp."""
    desired = (stream_budget // (2 * Np * itemsize)) // 128 * 128
    desired = max(128, min(desired, Mp))
    if Mp % desired == 0:
        return int(desired)
    # Largest multiple-of-128 divisor of Mp that is <= desired.
    q = Mp // 128
    want = desired // 128
    best = 1
    t = 1
    while t * t <= q:
        if q % t == 0:
            for cand in (t, q // t):
                if cand <= want and cand > best:
                    best = cand
        t += 1
    return int(best * 128)


def _prep_features(x_nchw, compute_dtype):
    a, b, c, d = x_nchw.shape
    N, M = a * b, c * d
    itemsize = compute_dtype.itemsize
    # bf16 vregs pack [16,128]; align sublanes to the packed count.
    sublane = 16 if itemsize == 2 else (32 if itemsize == 1 else 8)
    Np = _round_up(N, sublane)
    Mp = _round_up(M, 128)
    stream_budget, limit_cap = _budgets()
    tk = _choose_tk(Mp, Np, itemsize, stream_budget)
    feats = x_nchw.reshape(N, M).astype(compute_dtype)      # glue (fused by jit)
    feats_p = jnp.pad(feats, ((0, Np - N), (0, Mp - M)))
    return feats_p, N, M, Np, Mp, tk, itemsize, limit_cap


# --------------------------------------------------------------------------
# jitted wrappers
# --------------------------------------------------------------------------
@functools.partial(jax.jit, static_argnums=(2,))
def _gram_and_mse_impl(x_nchw, target_gram, compute_dtype_name):
    compute_dtype = jnp.dtype(compute_dtype_name)
    a, b, c, d = x_nchw.shape
    feats_p, N, M, Np, Mp, tk, itemsize, limit_cap = _prep_features(
        x_nchw, compute_dtype)
    inv_norm = 1.0 / float(a * b * c * d)
    inv_count = 1.0 / float(N * N)
    target_p = jnp.pad(target_gram.astype(jnp.float32),
                       ((0, Np - N), (0, Np - N)))

    vmem_bytes = (
        2 * Np * tk * itemsize      # double-buffered feature tiles
        + 2 * Np * Np * 4           # resident gram output (+ writeback buffer)
        + Np * Np * 4               # target scratch (single buffer)
        + (2 << 20)                 # headroom
    )
    vmem_limit = int(min(max(vmem_bytes, 16 << 20), limit_cap))

    kernel = functools.partial(_gram_mse_kernel,
                               inv_norm=inv_norm, inv_count=inv_count)

    G_p, loss = pl.pallas_call(
        kernel,
        out_shape=(
            jax.ShapeDtypeStruct((Np, Np), jnp.float32),   # gram matrix (padded)
            jax.ShapeDtypeStruct((1,), jnp.float32),       # scalar loss
        ),
        grid_spec=pltpu.PrefetchScalarGridSpec(
            num_scalar_prefetch=0,
            grid=(Mp // tk,),
            in_specs=[
                pl.BlockSpec((Np, tk), lambda k: (0, k)),  # streamed feature tiles
                pl.BlockSpec(memory_space=pl.ANY),         # target stays in HBM
            ],
            out_specs=[
                pl.BlockSpec((Np, Np), lambda k: (0, 0)),  # resident f32 accumulator
                pl.BlockSpec(memory_space=pltpu.SMEM),     # scalar loss
            ],
            scratch_shapes=[
                pltpu.VMEM((Np, Np), jnp.float32),         # target buffer
                pltpu.SemaphoreType.DMA(()),               # target DMA semaphore
            ],
        ),
        compiler_params=pltpu.CompilerParams(
            dimension_semantics=("arbitrary",),            # K-reduction axis
            vmem_limit_bytes=vmem_limit,
        ),
    )(feats_p, target_p)

    return G_p[:N, :N], loss[0]


@functools.partial(jax.jit, static_argnums=(1,))
def _gram_only_impl(x_nchw, compute_dtype_name):
    compute_dtype = jnp.dtype(compute_dtype_name)
    a, b, c, d = x_nchw.shape
    feats_p, N, M, Np, Mp, tk, itemsize, limit_cap = _prep_features(
        x_nchw, compute_dtype)
    inv_norm = 1.0 / float(a * b * c * d)

    vmem_bytes = 2 * Np * tk * itemsize + 2 * Np * Np * 4 + (2 << 20)
    vmem_limit = int(min(max(vmem_bytes, 16 << 20), limit_cap))

    kernel = functools.partial(_gram_kernel, inv_norm=inv_norm)

    G_p = pl.pallas_call(
        kernel,
        out_shape=jax.ShapeDtypeStruct((Np, Np), jnp.float32),
        grid_spec=pltpu.PrefetchScalarGridSpec(
            num_scalar_prefetch=0,
            grid=(Mp // tk,),
            in_specs=[pl.BlockSpec((Np, tk), lambda k: (0, k))],
            out_specs=pl.BlockSpec((Np, Np), lambda k: (0, 0)),
        ),
        compiler_params=pltpu.CompilerParams(
            dimension_semantics=("arbitrary",),
            vmem_limit_bytes=vmem_limit,
        ),
    )(feats_p)

    return G_p[:N, :N]


def gram_and_mse(x_nchw, target_gram, *, compute_dtype=jnp.float32):
    """Returns (G, loss): G = gram_matrix(x), loss = MSE(G, target_gram)."""
    return _gram_and_mse_impl(x_nchw, target_gram, jnp.dtype(compute_dtype).name)


def gram_matrix_pallas(x_nchw, *, compute_dtype=jnp.float32):
    """Returns gram_matrix(x) only (no target / MSE)."""
    return _gram_only_impl(x_nchw, jnp.dtype(compute_dtype).name)


# --------------------------------------------------------------------------
# module
# --------------------------------------------------------------------------
class StyleLossPallas:
    """Mirrors the PyTorch StyleLoss module: stores the detached target gram at
    init; forward computes self.loss and returns the input unchanged."""

    def __init__(self, target_feature, compute_dtype=jnp.float32):
        self.compute_dtype = compute_dtype
        target_G = gram_matrix_pallas(target_feature, compute_dtype=compute_dtype)
        self.target = jax.lax.stop_gradient(target_G)       # .detach()
        self.loss = None

    def __call__(self, x):
        _, loss = gram_and_mse(x, self.target, compute_dtype=self.compute_dtype)
        self.loss = loss
        return x                                             # pass-through


# --------------------------------------------------------------------------
# demo / self-test
# --------------------------------------------------------------------------
if __name__ == "__main__":
    key = jax.random.PRNGKey(0)
    k1, k2 = jax.random.split(key)

    # small shapes consistent with the module: NCHW, a*b = 8, c*d = 256
    a, b, c, d = 2, 4, 16, 16
    target_feature = jax.random.normal(k1, (a, b, c, d), dtype=jnp.float32)
    x = jax.random.normal(k2, (a, b, c, d), dtype=jnp.float32)

    # plain-JAX reference (full precision matmul)
    def gram_ref(t):
        f = t.reshape(a * b, c * d)
        return jnp.matmul(f, f.T, precision="highest") / (a * b * c * d)

    G_ref = gram_ref(x)
    T_ref = gram_ref(target_feature)
    loss_ref = jnp.mean((G_ref - T_ref) ** 2)

    # --- exact f32 path (matches PyTorch numerics) ---
    module = StyleLossPallas(target_feature)
    out = module(x)
    jax.block_until_ready(out)
    jax.block_until_ready(module.loss)

    assert out.shape == x.shape
    assert jnp.allclose(out, x)
    assert module.target.shape == (a * b, a * b)
    assert jnp.allclose(module.target, T_ref, rtol=1e-2, atol=1e-4)
    assert jnp.allclose(module.loss, loss_ref, rtol=1e-5, atol=1e-6), (
        module.loss, loss_ref)

    # also check the fused gram output directly
    G_pallas, _ = gram_and_mse(x, module.target)
    jax.block_until_ready(G_pallas)
    assert jnp.allclose(G_pallas, G_ref, rtol=1e-2, atol=1e-4)

    # --- bf16 fast path (f32 accumulation on the MXU), looser tolerance ---
    # NOTE: on this path the stored target gram is itself computed from bf16
    # features, so both G and target deviate slightly from f32 PyTorch numerics.
    module_bf16 = StyleLossPallas(target_feature, compute_dtype=jnp.bfloat16)
    out_bf16 = module_bf16(x)
    jax.block_until_ready(out_bf16)
    jax.block_until_ready(module_bf16.loss)

    assert jnp.allclose(out_bf16, x)
    assert jnp.allclose(module_bf16.loss, loss_ref, rtol=5e-2, atol=1e-6), (
        module_bf16.loss, loss_ref)

    print("KERNEL_OK")
</pallas_src>

<mosaic_0001>
module attributes {stable_mosaic.version = 11 : i64} {
  func.func @_gram_kernel(%arg0: i32, %arg1: memref<8x256xf32, #tpu.memory_space<vmem>>, %arg2: memref<8x8xf32, #tpu.memory_space<vmem>>) attributes {dimension_semantics = [#tpu.dimension_semantics<arbitrary>], iteration_bounds = array<i64: 1>, scalar_prefetch = 0 : i64, scratch_operands = 0 : i64, tpu.core_type = #tpu.core_type<tc>, window_params = [{transform_indices = @transform_0, window_bounds = array<i64: 8, 256>}, {pipeline_mode = #tpu.pipeline_mode<synchronous>, transform_indices = @transform_1, window_bounds = array<i64: 8, 8>}]} {
    %c0_i32 = arith.constant 0 : i32
    %0 = arith.cmpi eq, %arg0, %c0_i32 : i32
    %1 = arith.extui %0 : i1 to i32
    %c0_i32_0 = arith.constant 0 : i32
    %2 = arith.cmpi ne, %1, %c0_i32_0 : i32
    scf.if %2 {
      %cst_8 = arith.constant 0.000000e+00 : f32
      %11 = vector.broadcast %cst_8 : f32 to vector<8x8xf32>
      %c0_9 = arith.constant 0 : index
      %c0_10 = arith.constant 0 : index
      %12 = vector.load %arg2[%c0_9, %c0_10] : memref<8x8xf32, #tpu.memory_space<vmem>>, vector<8x8xf32>
      tpu.vector_store %arg2[%c0_9, %c0_10], %11 {strides = array<i32>} : memref<8x8xf32, #tpu.memory_space<vmem>>, vector<8x8xf32>,
    } else {
    }
    %c0 = arith.constant 0 : index
    %c0_1 = arith.constant 0 : index
    %3 = vector.load %arg1[%c0, %c0_1] : memref<8x256xf32, #tpu.memory_space<vmem>>, vector<8x256xf32>
    %c0_2 = arith.constant 0 : index
    %c0_3 = arith.constant 0 : index
    %4 = vector.load %arg2[%c0_2, %c0_3] : memref<8x8xf32, #tpu.memory_space<vmem>>, vector<8x8xf32>
    %cst = arith.constant dense<0.000000e+00> : vector<8x8xf32>
    %5 = tpu.matmul %3, %3, %cst {dimension_numbers = #tpu.dot_dimension_numbers<[1], [1], [0], [0], [0, 0, 1, 0], [], []>} : vector<8x256xf32>, vector<8x256xf32>, vector<8x8xf32> -> vector<8x8xf32>
    %6 = arith.addf %4, %5 : vector<8x8xf32>
    %c0_4 = arith.constant 0 : index
    %c0_5 = arith.constant 0 : index
    %7 = vector.load %arg2[%c0_4, %c0_5] : memref<8x8xf32, #tpu.memory_space<vmem>>, vector<8x8xf32>
    tpu.vector_store %arg2[%c0_4, %c0_5], %6 {strides = array<i32>} : memref<8x8xf32, #tpu.memory_space<vmem>>, vector<8x8xf32>,
    %c0_i32_6 = arith.constant 0 : i32
    %8 = arith.cmpi eq, %arg0, %c0_i32_6 : i32
    %9 = arith.extui %8 : i1 to i32
    %c0_i32_7 = arith.constant 0 : i32
    %10 = arith.cmpi ne, %9, %c0_i32_7 : i32
    scf.if %10 {
      %c0_8 = arith.constant 0 : index
      %c0_9 = arith.constant 0 : index
      %11 = vector.load %arg2[%c0_8, %c0_9] : memref<8x8xf32, #tpu.memory_space<vmem>>, vector<8x8xf32>
      %cst_10 = arith.constant 4.8828125E-4 : f32
      %12 = vector.broadcast %cst_10 : f32 to vector<8x8xf32>
      %13 = arith.mulf %11, %12 : vector<8x8xf32>
      %c0_11 = arith.constant 0 : index
      %c0_12 = arith.constant 0 : index
      %14 = vector.load %arg2[%c0_11, %c0_12] : memref<8x8xf32, #tpu.memory_space<vmem>>, vector<8x8xf32>
      tpu.vector_store %arg2[%c0_11, %c0_12], %13 {strides = array<i32>} : memref<8x8xf32, #tpu.memory_space<vmem>>, vector<8x8xf32>,
    } else {
    }
    return
  }
  func.func @transform_0(%arg0: i32) -> (i32, i32) {
    %c0_i32 = arith.constant 0 : i32
    %c0_i32_0 = arith.constant 0 : i32
    return %c0_i32, %arg0 : i32, i32
  }
  func.func @transform_1(%arg0: i32) -> (i32, i32) {
    %c0_i32 = arith.constant 0 : i32
    %c0_i32_0 = arith.constant 0 : i32
    %c0_i32_1 = arith.constant 0 : i32
    return %c0_i32, %c0_i32_0 : i32, i32
  }
}

</mosaic_0001>

<llo_original>
// kernel: _gram_only_impl.1
$region0: #{_gram_only_impl.1}
  #allocation0 [shape = 'u32[]', space=smem, size = 0x4, offset = 0x4, fixed_abs, tag = 'smem constant byte address 0x4 - core index']
  #allocation1 [shape = 'u32[144,128]{1,0:T(1,128)}', space=vmem, size = 0x12000, scoped, tag = 'internal scratch']
  %s0 = inlined_call_operand.vmem [shape: f32[8,256], index: 0, kind: input, shape index: {}]
  %s1 = inlined_call_operand.hbm [shape: f32[8,8], index: 1, kind: output, shape index: {}]
  %s2 = sld [smem:[#allocation0]]
  $region22: #{_gram_only_impl.1} parent=0
    _
  %s4 = ssub.s32 1, %s2
  %s5 = scalar_select 0, %s4, %s2
  $region1: #{_gram_only_impl.1} parent=0
    #allocation2 [shape = 'u8[4096]{0}', space=vmem, size = 0x1000, scoped, tag = 'output window, operand 0, single buffered']
    #allocation3 [shape = 's32[1]{0}', space=sflag, size = 0x4, scoped, tag = 'scoped memory for _gram_only_impl.1']
    %6 = vsyncpa [#allocation3], 0
    // Predicated region
    $region2: #{_gram_only_impl.1} parent=1 // pred_check
      _
    $region3: #{_gram_only_impl.1} parent=1 // pred_check_branch
      %8 = sbr.rel (0) target = $region5
    $region4: #{_gram_only_impl.1} parent=1 // pred_region
      _
    $region5: #{_gram_only_impl.1} parent=1 // pred_fallthru
      _
    %p9 = scmp.eq.s32.totalorder 0, 0
    // Predicated region
    $region6: #{_gram_only_impl.1} parent=1 // pred_check
      %p10 = pneg %p9
    $region7: #{_gram_only_impl.1} parent=1 // pred_check_branch
      %12 = sbr.rel (%p10) target = $region9
    $region8: #{_gram_only_impl.1} parent=1 // pred_region
      %vm13 = vcmask 64512
      %14 = vst.msk [vmem:[#allocation2] sm:$0xff] %vm13, 0.0
    $region9: #{_gram_only_impl.1} parent=1 // pred_fallthru
      _
    %v15 = vld [vmem:[%s0] sm:$0xff]
    %v16 = vld [vmem:[%s0 + $0x8] sm:$0xff]
    %v17 = vld [vmem:[#allocation2] sm:$0xff]
    %18 = vmatprep.subr.mxu0 %v16
    %19 = vmatpush1.xpose.msra.mxu0 %v15
    %20 = vmatprep.subr.mxu0 0.0
    %21 = vmatpush1.xpose.msra.mxu0 0.0
    %22 = vmatprep.subr.mxu0 0.0
    %23 = vmatpush1.xpose.msra.mxu0 0.0
    %24 = vmatprep.subr.mxu0 0.0
    %25 = vmatpush1.xpose.msra.mxu0 0.0
    %26 = vmatprep.subr.mxu0 0.0
    %27 = vmatpush1.xpose.msra.mxu0 0.0
    %28 = vmatprep.subr.mxu0 0.0
    %29 = vmatpush1.xpose.msra.mxu0 0.0
    %30 = vmatprep.subr.mxu0 0.0
    %31 = vmatpush1.xpose.msra.mxu0 0.0
    %32 = vmatprep.subr.mxu0 0.0
    %33 = vmatpush1.xpose.msra.mxu0 0.0
    %34 = vmatprep.subr.mxu0 0.0
    %35 = vmatpush1.xpose.msra.mxu0 0.0
    %36 = vmatprep.subr.mxu0 0.0
    %37 = vmatpush1.xpose.msra.mxu0 0.0
    %38 = vmatprep.subr.mxu0 0.0
    %39 = vmatpush1.xpose.msra.mxu0 0.0
    %40 = vmatprep.subr.mxu0 0.0
    %41 = vmatpush1.xpose.msra.mxu0 0.0
    %42 = vmatprep.subr.mxu0 0.0
    %43 = vmatpush1.xpose.msra.mxu0 0.0
    %44 = vmatprep.subr.mxu0 0.0
    %45 = vmatpush1.xpose.msra.mxu0 0.0
    %46 = vmatprep.subr.mxu0 0.0
    %47 = vmatpush1.xpose.msra.mxu0 0.0
    %48 = vmatprep.subr.mxu0 0.0
    %49 = vmatpush1.xpose.msra.mxu0 0.0
    %50 = vmatprep.subr.mxu0 0.0
    %51 = vmatpush1.xpose.msra.mxu0 0.0
    %52 = vmatprep.subr.mxu0 0.0
    %53 = vmatpush1.xpose.msra.mxu0 0.0
    %54 = vmatprep.subr.mxu0 0.0
    %55 = vmatpush1.xpose.msra.mxu0 0.0
    %56 = vmatprep.subr.mxu0 0.0
    %57 = vmatpush1.xpose.msra.mxu0 0.0
    %58 = vmatprep.subr.mxu0 0.0
    %59 = vmatpush1.xpose.msra.mxu0 0.0
    %60 = vmatprep.subr.mxu0 0.0
    %61 = vmatpush1.xpose.msra.mxu0 0.0
    %62 = vmatprep.subr.mxu0 0.0
    %63 = vmatpush1.xpose.msra.mxu0 0.0
    %64 = vmatprep.subr.mxu0 0.0
    %65 = vmatpush1.xpose.msra.mxu0 0.0
    %66 = vmatprep.subr.mxu0 0.0
    %67 = vmatpush1.xpose.msra.mxu0 0.0
    %68 = vmatprep.subr.mxu0 0.0
    %69 = vmatpush1.xpose.msra.mxu0 0.0
    %70 = vmatprep.subr.mxu0 0.0
    %71 = vmatpush1.xpose.msra.mxu0 0.0
    %72 = vmatprep.subr.mxu0 0.0
    %73 = vmatpush1.xpose.msra.mxu0 0.0
    %74 = vmatprep.subr.mxu0 0.0
    %75 = vmatpush1.xpose.msra.mxu0 0.0
    %76 = vmatprep.subr.mxu0 0.0
    %77 = vmatpush1.xpose.msra.mxu0 0.0
    %78 = vmatprep.subr.mxu0 0.0
    %79 = vmatpush1.xpose.msra.mxu0 0.0
    %80 = vmatprep.subr.mxu0 0.0
    %81 = vmatpush1.xpose.msra.mxu0 0.0
    %82 = vmatprep.mubr.f32.mxu0 %v16
    %83 = vmatmul.mubr.f32.gmra.mrb[0].mxu0 %v15
    %v84 = vpop.f32.mrb[0].mxu0
    %v85 = vadd.f32 0.0, %v84
    %v86 = vpop.f32.mrb[0].mxu0
    %87 = vdwg.mxu0
    %v88 = vadd.f32 %v17, %v85
    %vm89 = vcmask 64512
    %90 = vst.msk [vmem:[#allocation2] sm:$0xff] %vm89, %v88
    // Predicated region
    $region10: #{_gram_only_impl.1} parent=1 // pred_check
      %p91 = pneg %p9
    $region11: #{_gram_only_impl.1} parent=1 // pred_check_branch
      %93 = sbr.rel (%p91) target = $region13
    $region12: #{_gram_only_impl.1} parent=1 // pred_region
      %v94 = vld [vmem:[#allocation2] sm:$0xff]
      %v95 = vmul.f32 %v94, 0.00048828125
      %96 = vst.msk [vmem:[#allocation2] sm:$0xff] %vm89, %v95
    $region13: #{_gram_only_impl.1} parent=1 // pred_fallthru
      _
    // Predicated region
    $region14: #{_gram_only_impl.1} parent=1 // pred_check
      _
    $region15: #{_gram_only_impl.1} parent=1 // pred_check_branch
      %98 = sbr.rel (0) target = $region17
    $region16: #{_gram_only_impl.1} parent=1 // pred_region
      %s100 = ssub.s32 128, 128
      %101 = vsyncadd [#allocation3], %s100
      %s103 = sshll.u32 [#allocation2], 4
      %s104 = int_to_ptr.vmem [resolvable:$true] %s103
      %106 = dma.vmem_to_hbm [thread:$0]  %s104, 128, %s1, [#allocation3]
    $region17: #{_gram_only_impl.1} parent=1 // pred_fallthru
      _
    // Predicated region
    $region18: #{_gram_only_impl.1} parent=1 // pred_check
      _
    $region19: #{_gram_only_impl.1} parent=1 // pred_check_branch
      %108 = sbr.rel (0) target = $region21
    $region20: #{_gram_only_impl.1} parent=1 // pred_region
      %109 = dma.done [#allocation3], 128
    $region21: #{_gram_only_impl.1} parent=1 // pred_fallthru
      _
    %110 = vsyncpa [#allocation3], 1

</llo_original>
